<compile_context>
chip_gen: v7x
topology: tpu7x:2x2x1
jax: 0.10.0
libtpu: 0.0.40
codegen_flags: <defaults>
</compile_context>

<pallas_src>
import functools

import jax
import jax.numpy as jnp
from jax.experimental import pallas as pl
from jax.experimental.pallas import tpu as pltpu


def _router_kernel(x_ref, w_ref, b_ref, noise_ref, out_ref, idx_ref, *,
                   top_k, num_experts):
    # Fused router matmul: (2E, D) . (tm, D)^T -> (2E, tm), rows on the lane axis.
    fused = jax.lax.dot_general(
        w_ref[...], x_ref[...],
        dimension_numbers=(((1,), (1,)), ((), ())),
        preferred_element_type=jnp.float32) + b_ref[...]

    logits = fused[:num_experts, :]            # (E, tm)
    noise_logits = fused[num_experts:, :]      # (E, tm)

    # softplus(noise_logits) = log(1 + exp(.)), numerically stable form.
    softplus = jnp.logaddexp(noise_logits, 0.0)
    noisy = logits + noise_ref[...] * softplus                      # (E, tm) f32

    e_dim, tm = noisy.shape
    expert_ids = jax.lax.broadcasted_iota(jnp.int32, (e_dim, tm), 0)  # hoisted
    neg_inf = jnp.float32(-jnp.inf)

    # Iterative top-k over the small static expert axis (sublane axis):
    # repeatedly take the max, record its index, scatter into `sparse`,
    # mask it out of `work`.
    work = noisy
    sparse = jnp.full_like(noisy, neg_inf)
    idx_rows = []
    for _ in range(top_k):
        m = jnp.max(work, axis=0, keepdims=True)                    # (1, tm)
        # smallest index among ties (matches lax.top_k / torch tie handling)
        idx = jnp.min(jnp.where(work == m, expert_ids, e_dim),
                      axis=0, keepdims=True)                        # (1, tm)
        sel = expert_ids == idx
        sparse = jnp.where(sel, noisy, sparse)
        work = jnp.where(sel, neg_inf, work)
        idx_rows.append(idx)

    idx_ref[...] = jnp.concatenate(idx_rows, axis=0).astype(jnp.int32)

    # softmax over the sparse (-inf-filled) logits along the expert axis.
    m = jnp.max(sparse, axis=0, keepdims=True)
    e = jnp.exp(sparse - m)
    out_ref[...] = e / jnp.sum(e, axis=0, keepdims=True)


def noisy_topk_router(mh_output, w1, b1, w2, b2, noise, top_k, *,
                      tm=512, compute_dtype=jnp.bfloat16):
    """mh_output: (B,T,D); w1/w2: (E,D) torch-style; b1/b2: (E,); noise: (B,T,E)."""
    B, T, D = mh_output.shape
    E = w1.shape[0]
    rows = B * T

    # Lane-dense row tile: multiple of 128, no larger than the padded row count.
    tm = max(128, min((int(tm) // 128) * 128, pl.cdiv(rows, 128) * 128))
    rows_p = pl.cdiv(rows, tm) * tm
    grid = rows_p // tm

    # x rows: bf16 for the MXU (halves the dominant HBM stream); f32 accumulate.
    x = mh_output.reshape(rows, D).astype(compute_dtype)
    if rows_p != rows:
        x = jnp.pad(x, ((0, rows_p - rows), (0, 0)))

    # noise transposed to (E, rows): rows end up on the lane axis in-kernel.
    noise_t = jnp.transpose(noise.reshape(rows, E)).astype(jnp.float32)
    if rows_p != rows:
        noise_t = jnp.pad(noise_t, ((0, 0), (0, rows_p - rows)))

    # Fuse the two Linear layers: one (2E, D) weight, one (2E, 1) bias.
    wcat = jnp.concatenate([w1, w2], axis=0).astype(compute_dtype)          # (2E, D)
    bcat = jnp.concatenate([b1, b2], axis=0).reshape(2 * E, 1).astype(jnp.float32)

    kernel = functools.partial(_router_kernel, top_k=top_k, num_experts=E)

    out_t, idx_t = pl.pallas_call(
        kernel,
        out_shape=(
            jax.ShapeDtypeStruct((E, rows_p), jnp.float32),
            jax.ShapeDtypeStruct((top_k, rows_p), jnp.int32),
        ),
        grid_spec=pltpu.PrefetchScalarGridSpec(
            num_scalar_prefetch=0,
            grid=(grid,),
            in_specs=[
                pl.BlockSpec((tm, D), lambda i: (i, 0)),        # x rows tile
                pl.BlockSpec((2 * E, D), lambda i: (0, 0)),     # fused W (full)
                pl.BlockSpec((2 * E, 1), lambda i: (0, 0)),     # fused bias
                pl.BlockSpec((E, tm), lambda i: (0, i)),        # noise (E, rows)
            ],
            out_specs=[
                pl.BlockSpec((E, tm), lambda i: (0, i)),        # router output^T
                pl.BlockSpec((top_k, tm), lambda i: (0, i)),    # indices^T
            ],
        ),
        compiler_params=pltpu.CompilerParams(
            dimension_semantics=("parallel",)),
    )(x, wcat, bcat, noise_t)

    router_out = jnp.transpose(out_t[:, :rows]).reshape(B, T, E)
    indices = jnp.transpose(idx_t[:, :rows]).reshape(B, T, top_k)
    return router_out, indices


def _reference(mh_output, w1, b1, w2, b2, noise, top_k, compute_dtype):
    """Plain-JAX reference mirroring the PyTorch forward (noise passed in),
    with the same bf16-matmul / f32-accumulate dtype policy as the kernel."""
    xd = mh_output.astype(compute_dtype)
    logits = jnp.dot(xd, w1.astype(compute_dtype).T,
                     preferred_element_type=jnp.float32) + b1
    noise_logits = jnp.dot(xd, w2.astype(compute_dtype).T,
                           preferred_element_type=jnp.float32) + b2
    noisy = logits + noise * jnp.logaddexp(noise_logits, 0.0)
    _, top_idx = jax.lax.top_k(noisy, top_k)
    onehot = jax.nn.one_hot(top_idx, w1.shape[0], dtype=jnp.bool_).any(axis=-2)
    sparse = jnp.where(onehot, noisy, -jnp.inf)
    return jax.nn.softmax(sparse, axis=-1), top_idx.astype(jnp.int32)


if __name__ == "__main__":
    # Small shapes: batch=2, seq=8, n_embd=32, num_experts=8, top_k=2
    B, T, n_embd, num_experts, top_k = 2, 8, 32, 8, 2

    key = jax.random.PRNGKey(0)
    kx, kw1, kb1, kw2, kb2, kn = jax.random.split(key, 6)

    # Deterministic parameter init (PyTorch Linear-style uniform bound).
    bound = 1.0 / (n_embd ** 0.5)
    w1 = jax.random.uniform(kw1, (num_experts, n_embd), jnp.float32, -bound, bound)
    b1 = jax.random.uniform(kb1, (num_experts,), jnp.float32, -bound, bound)
    w2 = jax.random.uniform(kw2, (num_experts, n_embd), jnp.float32, -bound, bound)
    b2 = jax.random.uniform(kb2, (num_experts,), jnp.float32, -bound, bound)

    mh_output = jax.random.normal(kx, (B, T, n_embd), jnp.float32)
    # torch.randn_like(logits) equivalent, generated outside the kernel.
    noise = jax.random.normal(kn, (B, T, num_experts), jnp.float32)

    router_out, indices = noisy_topk_router(
        mh_output, w1, b1, w2, b2, noise, top_k)
    jax.block_until_ready((router_out, indices))

    ref_out, ref_idx = _reference(mh_output, w1, b1, w2, b2, noise, top_k,
                                  jnp.bfloat16)
    assert jnp.allclose(router_out, ref_out, atol=1e-4, rtol=1e-4)
    assert jnp.array_equal(jnp.sort(indices, axis=-1),
                           jnp.sort(ref_idx, axis=-1))

    print("KERNEL_OK")
</pallas_src>

<mosaic_0001>
module attributes {stable_mosaic.version = 11 : i64} {
  func.func @_router_kernel(%arg0: i32, %arg1: memref<128x32xbf16, #tpu.memory_space<vmem>>, %arg2: memref<16x32xbf16, #tpu.memory_space<vmem>>, %arg3: memref<16x1xf32, #tpu.memory_space<vmem>>, %arg4: memref<8x128xf32, #tpu.memory_space<vmem>>, %arg5: memref<8x128xf32, #tpu.memory_space<vmem>>, %arg6: memref<2x128xi32, #tpu.memory_space<vmem>>) attributes {dimension_semantics = [#tpu.dimension_semantics<parallel>], iteration_bounds = array<i64: 1>, scalar_prefetch = 0 : i64, scratch_operands = 0 : i64, tpu.core_type = #tpu.core_type<tc>, window_params = [{transform_indices = @transform_0, window_bounds = array<i64: 128, 32>}, {pipeline_mode = #tpu.pipeline_mode<synchronous>, transform_indices = @transform_1, window_bounds = array<i64: 16, 32>}, {pipeline_mode = #tpu.pipeline_mode<synchronous>, transform_indices = @transform_2, window_bounds = array<i64: 16, 1>}, {transform_indices = @transform_3, window_bounds = array<i64: 8, 128>}, {transform_indices = @transform_4, window_bounds = array<i64: 8, 128>}, {transform_indices = @transform_5, window_bounds = array<i64: 2, 128>}]} {
    %c0 = arith.constant 0 : index
    %c0_0 = arith.constant 0 : index
    %0 = vector.load %arg2[%c0, %c0_0] : memref<16x32xbf16, #tpu.memory_space<vmem>>, vector<16x32xbf16>
    %c0_1 = arith.constant 0 : index
    %c0_2 = arith.constant 0 : index
    %1 = vector.load %arg1[%c0_1, %c0_2] : memref<128x32xbf16, #tpu.memory_space<vmem>>, vector<128x32xbf16>
    %cst = arith.constant dense<0.000000e+00> : vector<16x128xf32>
    %2 = tpu.matmul %0, %1, %cst {dimension_numbers = #tpu.dot_dimension_numbers<[1], [1], [0], [0], [0, 0, 1, 0], [], []>} : vector<16x32xbf16>, vector<128x32xbf16>, vector<16x128xf32> -> vector<16x128xf32>
    %c0_3 = arith.constant 0 : index
    %c0_4 = arith.constant 0 : index
    %3 = vector.load %arg3[%c0_3, %c0_4] : memref<16x1xf32, #tpu.memory_space<vmem>>, vector<16x1xf32>
    %4 = vector.broadcast %3 : vector<16x1xf32> to vector<16x128xf32>
    %5 = arith.addf %2, %4 : vector<16x128xf32>
    %6 = vector.extract_strided_slice %5 {offsets = [0, 0], sizes = [8, 128], strides = [1, 1]} : vector<16x128xf32> to vector<8x128xf32>
    %7 = vector.extract_strided_slice %5 {offsets = [8, 0], sizes = [8, 128], strides = [1, 1]} : vector<16x128xf32> to vector<8x128xf32>
    %cst_5 = arith.constant 0.000000e+00 : f32
    %8 = vector.broadcast %cst_5 : f32 to vector<8x128xf32>
    %9 = arith.maximumf %7, %8 : vector<8x128xf32>
    %10 = vector.broadcast %cst_5 : f32 to vector<8x128xf32>
    %11 = arith.subf %7, %10 : vector<8x128xf32>
    %12 = arith.cmpf one, %11, %11 : vector<8x128xf32>
    %13 = vector.broadcast %cst_5 : f32 to vector<8x128xf32>
    %14 = arith.addf %7, %13 : vector<8x128xf32>
    %15 = math.absf %11 : vector<8x128xf32>
    %cst_6 = arith.constant 0.000000e+00 : f32
    %16 = vector.broadcast %cst_6 : f32 to vector<8x128xf32>
    %17 = arith.subf %16, %15 : vector<8x128xf32>
    %18 = math.exp %17 : vector<8x128xf32>
    %19 = math.log1p %18 : vector<8x128xf32>
    %20 = arith.addf %9, %19 : vector<8x128xf32>
    %21 = arith.select %12, %14, %20 : vector<8x128xi1>, vector<8x128xf32>
    %c0_7 = arith.constant 0 : index
    %c0_8 = arith.constant 0 : index
    %22 = vector.load %arg4[%c0_7, %c0_8] : memref<8x128xf32, #tpu.memory_space<vmem>>, vector<8x128xf32>
    %23 = arith.mulf %22, %21 : vector<8x128xf32>
    %24 = arith.addf %6, %23 : vector<8x128xf32>
    %25 = tpu.iota {dimensions = array<i32: 0>} : vector<8x128xi32>
    %cst_9 = arith.constant 0xFF800000 : f32
    %26 = vector.broadcast %cst_9 : f32 to vector<8x128xf32>
    %cst_10 = arith.constant dense<0xFF800000> : vector<128xf32>
    %27 = vector.multi_reduction <maximumf>, %24, %cst_10 [0] : vector<8x128xf32> to vector<128xf32>
    %28 = vector.shape_cast %27 : vector<128xf32> to vector<1x128xf32>
    %29 = vector.broadcast %28 : vector<1x128xf32> to vector<8x128xf32>
    %30 = arith.cmpf oeq, %24, %29 : vector<8x128xf32>
    %c8_i32 = arith.constant 8 : i32
    %31 = vector.broadcast %c8_i32 : i32 to vector<8x128xi32>
    %32 = arith.select %30, %25, %31 : vector<8x128xi1>, vector<8x128xi32>
    %cst_11 = arith.constant dense<2147483647> : vector<128xi32>
    %33 = vector.multi_reduction <minsi>, %32, %cst_11 [0] : vector<8x128xi32> to vector<128xi32>
    %34 = vector.shape_cast %33 : vector<128xi32> to vector<1x128xi32>
    %35 = vector.broadcast %34 : vector<1x128xi32> to vector<8x128xi32>
    %36 = arith.cmpi eq, %25, %35 : vector<8x128xi32>
    %37 = arith.select %36, %24, %26 : vector<8x128xi1>, vector<8x128xf32>
    %cst_12 = arith.constant 0xFF800000 : f32
    %38 = vector.broadcast %cst_12 : f32 to vector<8x128xf32>
    %39 = arith.select %36, %38, %24 : vector<8x128xi1>, vector<8x128xf32>
    %cst_13 = arith.constant dense<0xFF800000> : vector<128xf32>
    %40 = vector.multi_reduction <maximumf>, %39, %cst_13 [0] : vector<8x128xf32> to vector<128xf32>
    %41 = vector.shape_cast %40 : vector<128xf32> to vector<1x128xf32>
    %42 = vector.broadcast %41 : vector<1x128xf32> to vector<8x128xf32>
    %43 = arith.cmpf oeq, %39, %42 : vector<8x128xf32>
    %c8_i32_14 = arith.constant 8 : i32
    %44 = vector.broadcast %c8_i32_14 : i32 to vector<8x128xi32>
    %45 = arith.select %43, %25, %44 : vector<8x128xi1>, vector<8x128xi32>
    %cst_15 = arith.constant dense<2147483647> : vector<128xi32>
    %46 = vector.multi_reduction <minsi>, %45, %cst_15 [0] : vector<8x128xi32> to vector<128xi32>
    %47 = vector.shape_cast %46 : vector<128xi32> to vector<1x128xi32>
    %48 = vector.broadcast %47 : vector<1x128xi32> to vector<8x128xi32>
    %49 = arith.cmpi eq, %25, %48 : vector<8x128xi32>
    %50 = arith.select %49, %24, %37 : vector<8x128xi1>, vector<8x128xf32>
    %51 = tpu.concatenate %34, %47 in 0 : vector<1x128xi32>, vector<1x128xi32> -> vector<2x128xi32>
    %c0_16 = arith.constant 0 : index
    %c0_17 = arith.constant 0 : index
    %52 = vector.load %arg6[%c0_16, %c0_17] : memref<2x128xi32, #tpu.memory_space<vmem>>, vector<2x128xi32>
    tpu.vector_store %arg6[%c0_16, %c0_17], %51 {strides = array<i32>} : memref<2x128xi32, #tpu.memory_space<vmem>>, vector<2x128xi32>,
    %cst_18 = arith.constant dense<0xFF800000> : vector<128xf32>
    %53 = vector.multi_reduction <maximumf>, %50, %cst_18 [0] : vector<8x128xf32> to vector<128xf32>
    %54 = vector.shape_cast %53 : vector<128xf32> to vector<1x128xf32>
    %55 = vector.broadcast %54 : vector<1x128xf32> to vector<8x128xf32>
    %56 = arith.subf %50, %55 : vector<8x128xf32>
    %57 = math.exp %56 : vector<8x128xf32>
    %cst_19 = arith.constant dense<0.000000e+00> : vector<128xf32>
    %58 = vector.multi_reduction <add>, %57, %cst_19 [0] : vector<8x128xf32> to vector<128xf32>
    %59 = vector.shape_cast %58 : vector<128xf32> to vector<1x128xf32>
    %60 = vector.broadcast %59 : vector<1x128xf32> to vector<8x128xf32>
    %61 = arith.divf %57, %60 : vector<8x128xf32>
    %c0_20 = arith.constant 0 : index
    %c0_21 = arith.constant 0 : index
    %62 = vector.load %arg5[%c0_20, %c0_21] : memref<8x128xf32, #tpu.memory_space<vmem>>, vector<8x128xf32>
    tpu.vector_store %arg5[%c0_20, %c0_21], %61 {strides = array<i32>} : memref<8x128xf32, #tpu.memory_space<vmem>>, vector<8x128xf32>,
    return
  }
  func.func @transform_0(%arg0: i32) -> (i32, i32) {
    %c0_i32 = arith.constant 0 : i32
    %c0_i32_0 = arith.constant 0 : i32
    return %arg0, %c0_i32 : i32, i32
  }
  func.func @transform_1(%arg0: i32) -> (i32, i32) {
    %c0_i32 = arith.constant 0 : i32
    %c0_i32_0 = arith.constant 0 : i32
    %c0_i32_1 = arith.constant 0 : i32
    return %c0_i32, %c0_i32_0 : i32, i32
  }
  func.func @transform_2(%arg0: i32) -> (i32, i32) {
    %c0_i32 = arith.constant 0 : i32
    %c0_i32_0 = arith.constant 0 : i32
    %c0_i32_1 = arith.constant 0 : i32
    return %c0_i32, %c0_i32_0 : i32, i32
  }
  func.func @transform_3(%arg0: i32) -> (i32, i32) {
    %c0_i32 = arith.constant 0 : i32
    %c0_i32_0 = arith.constant 0 : i32
    return %c0_i32, %arg0 : i32, i32
  }
  func.func @transform_4(%arg0: i32) -> (i32, i32) {
    %c0_i32 = arith.constant 0 : i32
    %c0_i32_0 = arith.constant 0 : i32
    return %c0_i32, %arg0 : i32, i32
  }
  func.func @transform_5(%arg0: i32) -> (i32, i32) {
    %c0_i32 = arith.constant 0 : i32
    %c0_i32_0 = arith.constant 0 : i32
    return %c0_i32, %arg0 : i32, i32
  }
}

</mosaic_0001>

<llo_original>
// kernel: tpu_custom_call.1
$region0: #{tpu_custom_call.1}
  #allocation0 [shape = 'u32[]', space=smem, size = 0x4, offset = 0x4, fixed_abs, tag = 'smem constant byte address 0x4 - core index']
  #allocation1 [shape = 'u32[144,128]{1,0:T(1,128)}', space=vmem, size = 0x12000, scoped, tag = 'internal scratch']
  %s0 = inlined_call_operand.vmem [shape: bf16[128,32], index: 0, kind: input, shape index: {}]
  %s1 = inlined_call_operand.vmem [shape: bf16[16,32], index: 1, kind: input, shape index: {}]
  %s2 = inlined_call_operand.vmem [shape: f32[16,1], index: 2, kind: input, shape index: {}]
  %s3 = inlined_call_operand.vmem [shape: f32[8,128], index: 3, kind: input, shape index: {}]
  %s4 = inlined_call_operand.hbm [shape: f32[8,128], index: 4, kind: output, shape index: {0}]
  %s5 = inlined_call_operand.hbm [shape: s32[2,128], index: 5, kind: output, shape index: {1}]
  %6 = xla_tuple %s4, %s5
  %s7 = sld [smem:[#allocation0]]
  $region34: #{tpu_custom_call.1} parent=0
    _
  %s9 = ssub.s32 1, %s7
  %s10 = scalar_select 0, %s9, %s7
  $region1: #{tpu_custom_call.1} parent=0
    #allocation2 [shape = 'u8[4096]{0}', space=vmem, size = 0x1000, scoped, tag = 'output window, operand 0, single buffered']
    #allocation3 [shape = 's32[1]{0}', space=sflag, size = 0x4, scoped, tag = 'scoped memory for tpu_custom_call.1']
    #allocation4 [shape = 'u8[1024]{0}', space=vmem, size = 0x400, scoped, tag = 'output window, operand 1, single buffered']
    #allocation5 [shape = 's32[1]{0}', space=sflag, size = 0x4, scoped, tag = 'scoped memory for tpu_custom_call.1']
    %11 = vsyncpa [#allocation3], 0
    %12 = vsyncpa [#allocation5], 0
    // Predicated region
    $region2: #{tpu_custom_call.1} parent=1 // pred_check
      _
    $region3: #{tpu_custom_call.1} parent=1 // pred_check_branch
      %14 = sbr.rel (0) target = $region5
    $region4: #{tpu_custom_call.1} parent=1 // pred_region
      _
    $region5: #{tpu_custom_call.1} parent=1 // pred_fallthru
      _
    // Predicated region
    $region6: #{tpu_custom_call.1} parent=1 // pred_check
      _
    $region7: #{tpu_custom_call.1} parent=1 // pred_check_branch
      %16 = sbr.rel (0) target = $region9
    $region8: #{tpu_custom_call.1} parent=1 // pred_region
      _
    $region9: #{tpu_custom_call.1} parent=1 // pred_fallthru
      _
    // Predicated region
    $region10: #{tpu_custom_call.1} parent=1 // pred_check
      _
    $region11: #{tpu_custom_call.1} parent=1 // pred_check_branch
      %18 = sbr.rel (0) target = $region13
    $region12: #{tpu_custom_call.1} parent=1 // pred_region
      _
    $region13: #{tpu_custom_call.1} parent=1 // pred_fallthru
      _
    // Predicated region
    $region14: #{tpu_custom_call.1} parent=1 // pred_check
      _
    $region15: #{tpu_custom_call.1} parent=1 // pred_check_branch
      %20 = sbr.rel (0) target = $region17
    $region16: #{tpu_custom_call.1} parent=1 // pred_region
      _
    $region17: #{tpu_custom_call.1} parent=1 // pred_fallthru
      _
    %v22 = vld [vmem:[%s1] sm:$0xf]
    %v23 = vld [vmem:[%s1 + $0x4] sm:$0xf]
    %v24 = vld [vmem:[%s0] sm:$0xf]
    %v25 = vld [vmem:[%s0 + $0x4] sm:$0xf]
    %v26 = vld [vmem:[%s0 + $0x8] sm:$0xf]
    %v27 = vld [vmem:[%s0 + $0xc] sm:$0xf]
    %v28 = vld [vmem:[%s0 + $0x10] sm:$0xf]
    %v29 = vld [vmem:[%s0 + $0x14] sm:$0xf]
    %v30 = vld [vmem:[%s0 + $0x18] sm:$0xf]
    %v31 = vld [vmem:[%s0 + $0x1c] sm:$0xf]
    %v32 = vld [vmem:[%s0 + $0x20] sm:$0xf]
    %v33 = vld [vmem:[%s0 + $0x24] sm:$0xf]
    %v34 = vld [vmem:[%s0 + $0x28] sm:$0xf]
    %v35 = vld [vmem:[%s0 + $0x2c] sm:$0xf]
    %v36 = vld [vmem:[%s0 + $0x30] sm:$0xf]
    %v37 = vld [vmem:[%s0 + $0x34] sm:$0xf]
    %v38 = vld [vmem:[%s0 + $0x38] sm:$0xf]
    %v39 = vld [vmem:[%s0 + $0x3c] sm:$0xf]
    %v40 = vld [vmem:[%s2] sm:$0xff]
    %v41 = vld [vmem:[%s2 + $0x8] sm:$0xff]
    %43 = vset.pattern.permute.xlu0 0
    %44 = vperm.xlu0 %43, %v40
    %v45 = vpop.permute.xlu0 %44
    %48 = vset.pattern.permute.xlu0 0
    %49 = vperm.xlu0 %48, %v41
    %v50 = vpop.permute.xlu0 %49
    %v54 = vunpack.c.l.b16 %v22
    %v55 = vunpack.c.l.b16 %v23
    %v56 = vpack.c.b16 %v55, %v54
    %v73 = vunpack.c.l.b16 %v24
    %v74 = vunpack.c.l.b16 %v25
    %v75 = vunpack.c.l.b16 %v26
    %v76 = vunpack.c.l.b16 %v27
    %v77 = vunpack.c.l.b16 %v28
    %v78 = vunpack.c.l.b16 %v29
    %v79 = vunpack.c.l.b16 %v30
    %v80 = vunpack.c.l.b16 %v31
    %v81 = vunpack.c.l.b16 %v32
    %v82 = vunpack.c.l.b16 %v33
    %v83 = vunpack.c.l.b16 %v34
    %v84 = vunpack.c.l.b16 %v35
    %v85 = vunpack.c.l.b16 %v36
    %v86 = vunpack.c.l.b16 %v37
    %v87 = vunpack.c.l.b16 %v38
    %v88 = vunpack.c.l.b16 %v39
    %v89 = vpack.c.b16 %v74, %v73
    %v90 = vpack.c.b16 %v76, %v75
    %v91 = vpack.c.b16 %v78, %v77
    %v92 = vpack.c.b16 %v80, %v79
    %v93 = vpack.c.b16 %v82, %v81
    %v94 = vpack.c.b16 %v84, %v83
    %v95 = vpack.c.b16 %v86, %v85
    %v96 = vpack.c.b16 %v88, %v87
    %vm97 = vcmask 261120
    %v99 = vsel %vm97, %v56, 0
    %v102 = vsel %vm97, %v89, 0
    %v105 = vsel %vm97, %v90, 0
    %v108 = vsel %vm97, %v91, 0
    %v111 = vsel %vm97, %v92, 0
    %v114 = vsel %vm97, %v93, 0
    %v117 = vsel %vm97, %v94, 0
    %v120 = vsel %vm97, %v95, 0
    %v123 = vsel %vm97, %v96, 0
    %125 = vmatprep.subr.bf16.mxu0 0
    %126 = vmatpush1.bf16.xpose.msra.mxu0 %v102
    %127 = vmatprep.subr.bf16.mxu0 0
    %128 = vmatpush1.bf16.xpose.msra.mxu0 %v105
    %129 = vmatprep.subr.bf16.mxu0 0
    %130 = vmatpush1.bf16.xpose.msra.mxu0 %v108
    %131 = vmatprep.subr.bf16.mxu0 0
    %132 = vmatpush1.bf16.xpose.msra.mxu0 %v111
    %133 = vmatprep.subr.bf16.mxu0 0
    %134 = vmatpush1.bf16.xpose.msra.mxu0 %v114
    %135 = vmatprep.subr.bf16.mxu0 0
    %136 = vmatpush1.bf16.xpose.msra.mxu0 %v117
    %137 = vmatprep.subr.bf16.mxu0 0
    %138 = vmatpush1.bf16.xpose.msra.mxu0 %v120
    %139 = vmatprep.subr.bf16.mxu0 0
    %140 = vmatpush1.bf16.xpose.msra.mxu0 %v123
    %141 = vmatprep.subr.bf16.mxu0 0
    %142 = vmatpush1.bf16.xpose.msra.mxu0 0
    %143 = vmatprep.subr.bf16.mxu0 0
    %144 = vmatpush1.bf16.xpose.msra.mxu0 0
    %145 = vmatprep.subr.bf16.mxu0 0
    %146 = vmatpush1.bf16.xpose.msra.mxu0 0
    %147 = vmatprep.subr.bf16.mxu0 0
    %148 = vmatpush1.bf16.xpose.msra.mxu0 0
    %149 = vmatprep.subr.bf16.mxu0 0
    %150 = vmatpush1.bf16.xpose.msra.mxu0 0
    %151 = vmatprep.subr.bf16.mxu0 0
    %152 = vmatpush1.bf16.xpose.msra.mxu0 0
    %153 = vmatprep.subr.bf16.mxu0 0
    %154 = vmatpush1.bf16.xpose.msra.mxu0 0
    %155 = vmatprep.subr.bf16.mxu0 0
    %156 = vmatpush1.bf16.xpose.msra.mxu0 0
    %157 = vmatprep.mubr.bf16.mxu0 0
    %158 = vmatmul.mubr.bf16.gmra.mrb[0].mxu0 %v99
    %v159 = vpop.f32.mrb[0].mxu0
    %v160 = vadd.f32 %v45, %v159
    %v161 = vpop.f32.mrb[0].mxu0
    %v162 = vpop.f32.mrb[0].mxu0
    %v163 = vadd.f32 %v50, %v162
    %v164 = vpop.f32.mrb[0].mxu0
    %165 = vdwg.mxu0
    %v166 = vmax.f32 %v163, 0.0
    %vm167 = vcmp.ne.f32.partialorder %v163, %v163
    %v168 = vadd.f32 %v163, 0.0
    %v169 = vand.u32 2147483647, %v163
    %v170 = vsub.f32 0.0, %v169
    %v171 = vmul.f32 %v170, 1.442695
    %v172 = vpow.pop %v171
    %v173 = vadd.f32 %v172, 1.0
    %v174 = vlog2.pop %v173
    %v175 = vmul.f32 %v174, 0.6931472
    %v176 = vmul.f32 -0.5, %v172
    %v177 = vadd.f32 %v176, 1.0
    %v178 = vmul.f32 %v177, %v172
    %v179 = vand.u32 2147483647, %v172
    %vm180 = vcmp.lt.f32.partialorder %v179, 0.0004427343
    %v181 = vsel %vm180, %v178, %v175
    %v182 = vadd.f32 %v166, %v181
    %v183 = vsel %vm167, %v168, %v182
    %v184 = vld [vmem:[%s3] sm:$0xff]
    %v185 = vmul.f32 %v184, %v183
    %v186 = vadd.f32 %v160, %v185
    %v187 = vlaneseq
    %v188 = vshrl.u32 %v187, 7
    %v189 = vrot.slane %v186, 4
    %v190 = vmax.f32 %v186, %v189
    %v191 = vrot.slane %v190, 2
    %v192 = vmax.f32 %v190, %v191
    %v193 = vrot.slane %v192, 1
    %v194 = vmax.f32 %v192, %v193
    %vm195 = vcmp.eq.f32.partialorder %v186, %v194
    %v196 = vsel %vm195, %v188, 8
    %v197 = vrot.slane %v196, 4
    %vm198 = vcmp.lt.s32.totalorder %v196, %v197
    %v199 = vsel %vm198, %v196, %v197
    %v200 = vrot.slane %v199, 2
    %vm201 = vcmp.lt.s32.totalorder %v199, %v200
    %v202 = vsel %vm201, %v199, %v200
    %v203 = vrot.slane %v202, 1
    %vm204 = vcmp.lt.s32.totalorder %v202, %v203
    %v205 = vsel %vm204, %v202, %v203
    %vm206 = vcmp.eq.s32.totalorder %v188, %v205
    %v207 = vsel %vm206, %v186, -inf
    %v208 = vsel %vm206, -inf, %v186
    %v209 = vrot.slane %v208, 4
    %v210 = vmax.f32 %v208, %v209
    %v211 = vrot.slane %v210, 2
    %v212 = vmax.f32 %v210, %v211
    %v213 = vrot.slane %v212, 1
    %v214 = vmax.f32 %v212, %v213
    %vm215 = vcmp.eq.f32.partialorder %v208, %v214
    %v216 = vsel %vm215, %v188, 8
    %v217 = vrot.slane %v216, 4
    %vm218 = vcmp.lt.s32.totalorder %v216, %v217
    %v219 = vsel %vm218, %v216, %v217
    %v220 = vrot.slane %v219, 2
    %vm221 = vcmp.lt.s32.totalorder %v219, %v220
    %v222 = vsel %vm221, %v219, %v220
    %v223 = vrot.slane %v222, 1
    %vm224 = vcmp.lt.s32.totalorder %v222, %v223
    %v225 = vsel %vm224, %v222, %v223
    %vm226 = vcmp.eq.s32.totalorder %v188, %v225
    %v227 = vsel %vm226, %v186, %v207
    %vm228 = vcmask 1040384
    %v229 = vsel %vm228, %v205, %v225
    %230 = vst [vmem:[#allocation4] sm:$0x3] %v229
    %v231 = vrot.slane %v227, 4
    %v232 = vmax.f32 %v227, %v231
    %v233 = vrot.slane %v232, 2
    %v234 = vmax.f32 %v232, %v233
    %v235 = vrot.slane %v234, 1
    %v236 = vmax.f32 %v234, %v235
    %v237 = vsub.f32 %v227, %v236
    %v238 = vmul.f32 %v237, 1.442695
    %v239 = vpow.pop %v238
    %v240 = vrot.slane %v239, 4
    %v241 = vadd.f32 %v239, %v240
    %v242 = vrot.slane %v241, 2
    %v243 = vadd.f32 %v241, %v242
    %v244 = vrot.slane %v243, 1
    %v245 = vadd.f32 %v243, %v244
    %v246 = vrcp.pop %v245
    %v247 = vmul.f32 %v239, %v246
    %248 = vst [vmem:[#allocation2] sm:$0xff] %v247
    // Predicated region
    $region18: #{tpu_custom_call.1} parent=1 // pred_check
      _
    $region19: #{tpu_custom_call.1} parent=1 // pred_check_branch
      %250 = sbr.rel (0) target = $region21
    $region20: #{tpu_custom_call.1} parent=1 // pred_region
      %s252 = ssub.s32 128, 128
      %253 = vsyncadd [#allocation3], %s252
      %s255 = sshll.u32 [#allocation2], 4
      %s256 = int_to_ptr.vmem [resolvable:$true] %s255
      %258 = dma.vmem_to_hbm [thread:$0]  %s256, 128, %s4, [#allocation3]
    $region21: #{tpu_custom_call.1} parent=1 // pred_fallthru
      _
    // Predicated region
    $region22: #{tpu_custom_call.1} parent=1 // pred_check
      _
    $region23: #{tpu_custom_call.1} parent=1 // pred_check_branch
      %260 = sbr.rel (0) target = $region25
    $region24: #{tpu_custom_call.1} parent=1 // pred_region
      %s262 = ssub.s32 32, 32
      %263 = vsyncadd [#allocation5], %s262
      %s265 = sshll.u32 [#allocation4], 4
      %s266 = int_to_ptr.vmem [resolvable:$true] %s265
      %268 = dma.vmem_to_hbm [thread:$0]  %s266, 32, %s5, [#allocation5]
    $region25: #{tpu_custom_call.1} parent=1 // pred_fallthru
      _
    // Predicated region
    $region26: #{tpu_custom_call.1} parent=1 // pred_check
      _
    $region27: #{tpu_custom_call.1} parent=1 // pred_check_branch
      %270 = sbr.rel (0) target = $region29
    $region28: #{tpu_custom_call.1} parent=1 // pred_region
      %271 = dma.done [#allocation3], 128
    $region29: #{tpu_custom_call.1} parent=1 // pred_fallthru
      _
    // Predicated region
    $region30: #{tpu_custom_call.1} parent=1 // pred_check
      _
    $region31: #{tpu_custom_call.1} parent=1 // pred_check_branch
      %273 = sbr.rel (0) target = $region33
    $region32: #{tpu_custom_call.1} parent=1 // pred_region
      %274 = dma.done [#allocation5], 32
    $region33: #{tpu_custom_call.1} parent=1 // pred_fallthru
      _
    %275 = vsyncpa [#allocation3], 1
    %276 = vsyncpa [#allocation5], 1

</llo_original>
